<compile_context>
chip_gen: v5e
topology: v5e:2x2
jax: 0.10.0
libtpu: 0.0.40
codegen_flags: <defaults>
</compile_context>

<pallas_src>
import jax
import jax.numpy as jnp
from jax import lax
from jax.experimental import pallas as pl
from jax.experimental.pallas import tpu as pltpu

# ---- configuration (small shapes consistent with the module defaults) ------
NUM_HEADS = 2
HEAD_SIZE = 16           # attention_head_size
N_EMBEDD = 32            # n_embedd  (== NUM_HEADS * HEAD_SIZE so proj works)
BLOCK_SIZE = 8           # block_size (== T, the context length)
BATCH = 2


def _mha_kernel(x_ref, wqkv_ref, wp_ref, bp_ref, o_ref):
    """Single invocation over the whole (B, T, C) problem.

    x_ref    : (B, T, C)   input tokens
    wqkv_ref : (C, 3H)     fused [q | k | v] projection weights; the 1/sqrt(H)
                           attention scale is pre-folded into the q columns
    wp_ref   : (H, C)      output projection with the shared-head concat folded
                           in (sum of the NUM_HEADS row-chunks of W_proj.T)
    bp_ref   : (1, C)      output projection bias
    o_ref    : (B, T, C)   output
    """
    B, T, C = x_ref.shape
    H = HEAD_SIZE

    # (B,T,C) -> (B*T,C): sublane-dim merge only (lane dim unchanged), cheap.
    x2 = x_ref[...].astype(jnp.float32).reshape(B * T, C)

    # One fused MXU push for q, k, v.
    qkv = jnp.dot(x2, wqkv_ref[...], preferred_element_type=jnp.float32)
    qkv = qkv.reshape(B, T, 3 * H)
    q = qkv[..., 0 * H:1 * H]          # already scaled by 1/sqrt(H)
    k = qkv[..., 1 * H:2 * H]
    v = qkv[..., 2 * H:3 * H]

    # Batched attention scores (B, T, T).
    scores = jnp.einsum("bqd,bkd->bqk", q, k,
                        preferred_element_type=jnp.float32)

    # Causal mask: position t may only attend to positions <= t.
    row = lax.broadcasted_iota(jnp.int32, (T, T), 0)
    col = lax.broadcasted_iota(jnp.int32, (T, T), 1)
    scores = jnp.where((col <= row)[None], scores, jnp.float32(-1e30))

    # Numerically-stable softmax; reciprocal routed to the (otherwise idle) EUP.
    scores = scores - jnp.max(scores, axis=-1, keepdims=True)
    p = jnp.exp(scores)
    p = p * pl.reciprocal(jnp.sum(p, axis=-1, keepdims=True), approx=True)

    head_out = jnp.einsum("bqk,bkd->bqd", p, v,
                          preferred_element_type=jnp.float32)   # (B, T, H)

    # Shared-head concat folded into wp_ref: out = head_out @ wp_fold + bias.
    out = jnp.dot(head_out.reshape(B * T, H), wp_ref[...],
                  preferred_element_type=jnp.float32)           # (B*T, C)
    out = out + bp_ref[...]
    o_ref[...] = out.reshape(B, T, C).astype(o_ref.dtype)


def prepare_params(wq, wk, wv, w_proj, b_proj):
    """Fold/fuse the weights ONCE, outside the per-call path.

    Returns:
      wqkv    : (C, 3H)  [wq * H**-0.5 | wk | wv]
      wp_fold : (H, C)   sum over the NUM_HEADS row-chunks of w_proj.T
      bp      : (1, C)
    """
    scale = jnp.float32(HEAD_SIZE) ** -0.5
    wqkv = jnp.concatenate([wq * scale, wk, wv], axis=-1)        # (C, 3H)
    wp_t = w_proj.T                                              # (C, C)
    wp_fold = sum(wp_t[i * HEAD_SIZE:(i + 1) * HEAD_SIZE, :]
                  for i in range(NUM_HEADS))                     # (H, C)
    bp = b_proj.reshape(1, -1)                                   # (1, C)
    return wqkv, wp_fold, bp


def multi_head_attention(x, wqkv, wp_fold, bp):
    """x: (B, T, C); weights already prepared by prepare_params()."""
    B, T, C = x.shape
    vmem = pl.BlockSpec(memory_space=pltpu.MemorySpace.VMEM)
    return pl.pallas_call(
        _mha_kernel,
        out_shape=jax.ShapeDtypeStruct((B, T, C), x.dtype),
        in_specs=[vmem, vmem, vmem, vmem],
        out_specs=vmem,
    )(x, wqkv, wp_fold, bp)


def reference(x, wq, wk, wv, w_proj, b_proj):
    """Pure-JAX reference of the original (unfused) forward pass."""
    q = x @ wq
    k = x @ wk
    v = x @ wv
    scores = jnp.einsum("btd,bsd->bts", q, k) * (HEAD_SIZE ** -0.5)
    T = x.shape[1]
    mask = jnp.tril(jnp.ones((T, T), dtype=bool))
    scores = jnp.where(mask[None], scores, -1e30)
    p = jax.nn.softmax(scores, axis=-1)
    head_out = jnp.einsum("bts,bsd->btd", p, v)
    cat = jnp.concatenate([head_out] * NUM_HEADS, axis=-1)
    return cat @ w_proj.T + b_proj


if __name__ == "__main__":
    key = jax.random.PRNGKey(0)
    k_x, k_q, k_k, k_v, k_w, k_b = jax.random.split(key, 6)

    x = jax.random.normal(k_x, (BATCH, BLOCK_SIZE, N_EMBEDD), dtype=jnp.float32)

    # Deterministic parameter init (synthetic; shapes match the module ctor).
    wq = jax.random.normal(k_q, (N_EMBEDD, HEAD_SIZE), dtype=jnp.float32) * 0.1
    wk = jax.random.normal(k_k, (N_EMBEDD, HEAD_SIZE), dtype=jnp.float32) * 0.1
    wv = jax.random.normal(k_v, (N_EMBEDD, HEAD_SIZE), dtype=jnp.float32) * 0.1
    w_proj = jax.random.normal(k_w, (N_EMBEDD, N_EMBEDD), dtype=jnp.float32) * 0.1
    b_proj = jax.random.normal(k_b, (N_EMBEDD,), dtype=jnp.float32) * 0.1

    # Weight fusion/folding done once, outside the kernel call path.
    wqkv, wp_fold, bp = prepare_params(wq, wk, wv, w_proj, b_proj)

    out = multi_head_attention(x, wqkv, wp_fold, bp)
    out = jax.block_until_ready(out)

    ref = reference(x, wq, wk, wv, w_proj, b_proj)
    assert out.shape == (BATCH, BLOCK_SIZE, N_EMBEDD)
    # slightly relaxed tolerance: approx (EUP) reciprocal in the softmax denom
    assert jnp.allclose(out, ref, atol=2e-3, rtol=2e-3), float(
        jnp.max(jnp.abs(out - ref)))

    print("KERNEL_OK")
</pallas_src>

<mosaic_0001>
module attributes {stable_mosaic.version = 11 : i64} {
  func.func @_mha_kernel(%arg0: memref<2x8x32xf32, #tpu.memory_space<vmem>>, %arg1: memref<32x48xf32, #tpu.memory_space<vmem>>, %arg2: memref<16x32xf32, #tpu.memory_space<vmem>>, %arg3: memref<1x32xf32, #tpu.memory_space<vmem>>, %arg4: memref<2x8x32xf32, #tpu.memory_space<vmem>>) attributes {dimension_semantics = [], scalar_prefetch = 0 : i64, scratch_operands = 0 : i64, tpu.core_type = #tpu.core_type<tc>} {
    %c0 = arith.constant 0 : index
    %c0_0 = arith.constant 0 : index
    %c0_1 = arith.constant 0 : index
    %0 = vector.load %arg0[%c0, %c0_0, %c0_1] : memref<2x8x32xf32, #tpu.memory_space<vmem>>, vector<2x8x32xf32>
    %1 = vector.shape_cast %0 : vector<2x8x32xf32> to vector<16x32xf32>
    %c0_2 = arith.constant 0 : index
    %c0_3 = arith.constant 0 : index
    %2 = vector.load %arg1[%c0_2, %c0_3] : memref<32x48xf32, #tpu.memory_space<vmem>>, vector<32x48xf32>
    %cst = arith.constant dense<0.000000e+00> : vector<16x48xf32>
    %3 = tpu.matmul %1, %2, %cst {dimension_numbers = #tpu.dot_dimension_numbers<[1], [0], [0], [1], [0, 0, 1, 1], [], []>} : vector<16x32xf32>, vector<32x48xf32>, vector<16x48xf32> -> vector<16x48xf32>
    %4 = vector.shape_cast %3 : vector<16x48xf32> to vector<2x8x48xf32>
    %5 = vector.extract_strided_slice %4 {offsets = [0, 0, 0], sizes = [2, 8, 16], strides = [1, 1, 1]} : vector<2x8x48xf32> to vector<2x8x16xf32>
    %6 = vector.extract_strided_slice %4 {offsets = [0, 0, 16], sizes = [2, 8, 16], strides = [1, 1, 1]} : vector<2x8x48xf32> to vector<2x8x16xf32>
    %7 = vector.extract_strided_slice %4 {offsets = [0, 0, 32], sizes = [2, 8, 16], strides = [1, 1, 1]} : vector<2x8x48xf32> to vector<2x8x16xf32>
    "tpu.trace_start"() <{level = 10 : i32, message = "bqd,bkd->bqk"}> : () -> ()
    %cst_4 = arith.constant dense<0.000000e+00> : vector<2x8x8xf32>
    %8 = tpu.matmul %5, %6, %cst_4 {dimension_numbers = #tpu.dot_dimension_numbers<[2], [2], [1], [1], [0, 0, 0, 1, 1, 1], [0], [0]>} : vector<2x8x16xf32>, vector<2x8x16xf32>, vector<2x8x8xf32> -> vector<2x8x8xf32>
    "tpu.trace_stop"() : () -> ()
    %9 = tpu.iota {dimensions = array<i32: 0>} : vector<8x8xi32>
    %10 = tpu.iota {dimensions = array<i32: 1>} : vector<8x8xi32>
    %11 = arith.cmpi sle, %10, %9 : vector<8x8xi32>
    %12 = vector.shape_cast %11 : vector<8x8xi1> to vector<1x8x8xi1>
    %cst_5 = arith.constant -1.000000e+30 : f32
    %13 = vector.shape_cast %12 : vector<1x8x8xi1> to vector<1x8x8xi1>
    %14 = vector.broadcast %13 : vector<1x8x8xi1> to vector<2x8x8xi1>
    %15 = vector.broadcast %cst_5 : f32 to vector<2x8x8xf32>
    %16 = arith.select %14, %8, %15 : vector<2x8x8xi1>, vector<2x8x8xf32>
    %cst_6 = arith.constant dense<0xFF800000> : vector<2x8xf32>
    %17 = vector.multi_reduction <maximumf>, %16, %cst_6 [2] : vector<2x8x8xf32> to vector<2x8xf32>
    %18 = vector.shape_cast %17 : vector<2x8xf32> to vector<2x8x1xf32>
    %19 = vector.broadcast %18 : vector<2x8x1xf32> to vector<2x8x8xf32>
    %20 = arith.subf %16, %19 : vector<2x8x8xf32>
    %21 = math.exp %20 : vector<2x8x8xf32>
    %cst_7 = arith.constant dense<0.000000e+00> : vector<2x8xf32>
    %22 = vector.multi_reduction <add>, %21, %cst_7 [2] : vector<2x8x8xf32> to vector<2x8xf32>
    %23 = vector.shape_cast %22 : vector<2x8xf32> to vector<2x8x1xf32>
    %24 = tpu.reciprocal %23 {approx = true} : vector<2x8x1xf32> -> vector<2x8x1xf32>
    %25 = vector.broadcast %24 : vector<2x8x1xf32> to vector<2x8x8xf32>
    %26 = arith.mulf %21, %25 : vector<2x8x8xf32>
    "tpu.trace_start"() <{level = 10 : i32, message = "bqk,bkd->bqd"}> : () -> ()
    %cst_8 = arith.constant dense<0.000000e+00> : vector<2x8x16xf32>
    %27 = tpu.matmul %26, %7, %cst_8 {dimension_numbers = #tpu.dot_dimension_numbers<[2], [1], [1], [2], [0, 0, 0, 1, 1, 2], [0], [0]>} : vector<2x8x8xf32>, vector<2x8x16xf32>, vector<2x8x16xf32> -> vector<2x8x16xf32>
    "tpu.trace_stop"() : () -> ()
    %28 = vector.shape_cast %27 : vector<2x8x16xf32> to vector<16x16xf32>
    %c0_9 = arith.constant 0 : index
    %c0_10 = arith.constant 0 : index
    %29 = vector.load %arg2[%c0_9, %c0_10] : memref<16x32xf32, #tpu.memory_space<vmem>>, vector<16x32xf32>
    %cst_11 = arith.constant dense<0.000000e+00> : vector<16x32xf32>
    %30 = tpu.matmul %28, %29, %cst_11 {dimension_numbers = #tpu.dot_dimension_numbers<[1], [0], [0], [1], [0, 0, 1, 1], [], []>} : vector<16x16xf32>, vector<16x32xf32>, vector<16x32xf32> -> vector<16x32xf32>
    %c0_12 = arith.constant 0 : index
    %c0_13 = arith.constant 0 : index
    %31 = vector.load %arg3[%c0_12, %c0_13] : memref<1x32xf32, #tpu.memory_space<vmem>>, vector<1x32xf32>
    %32 = vector.broadcast %31 : vector<1x32xf32> to vector<16x32xf32>
    %33 = arith.addf %30, %32 : vector<16x32xf32>
    %34 = vector.shape_cast %33 : vector<16x32xf32> to vector<2x8x32xf32>
    %c0_14 = arith.constant 0 : index
    %c0_15 = arith.constant 0 : index
    %c0_16 = arith.constant 0 : index
    %35 = vector.load %arg4[%c0_14, %c0_15, %c0_16] : memref<2x8x32xf32, #tpu.memory_space<vmem>>, vector<2x8x32xf32>
    tpu.vector_store %arg4[%c0_14, %c0_15, %c0_16], %34 {strides = array<i32>} : memref<2x8x32xf32, #tpu.memory_space<vmem>>, vector<2x8x32xf32>,
    return
  }
}

</mosaic_0001>

<llo_original>
// kernel: tpu_custom_call.1
$region0: #{tpu_custom_call.1}
  #allocation0 [shape = 'u32[]', space=smem, size = 0x4, offset = 0x4, fixed_abs, tag = 'smem constant byte address 0x4 - core index']
  #allocation1 [shape = 'u32[72,128]{1,0:T(1,128)}', space=vmem, size = 0x9000, scoped, tag = 'internal scratch']
  %s0 = inlined_call_operand.hbm [shape: f32[2,8,32], index: 0, kind: input, shape index: {}]
  %s1 = inlined_call_operand.hbm [shape: f32[32,48], index: 1, kind: input, shape index: {}]
  %s2 = inlined_call_operand.hbm [shape: f32[16,32], index: 2, kind: input, shape index: {}]
  %s3 = inlined_call_operand.vmem [shape: f32[1,32], index: 3, kind: input, shape index: {}]
  %s4 = inlined_call_operand.hbm [shape: f32[2,8,32], index: 4, kind: output, shape index: {}]
  %s5 = sld [smem:[#allocation0]]
  $region38: #{tpu_custom_call.1} parent=0
    _
  %s7 = ssub.s32 1, %s5
  %s8 = scalar_select 0, %s7, %s5
  $region1: #{tpu_custom_call.1} parent=0
    #allocation2 [shape = 'u8[8192]{0}', space=vmem, size = 0x2000, scoped, tag = 'input window, operand 0, single buffered']
    #allocation3 [shape = 's32[1]{0}', space=sflag, size = 0x4, scoped, tag = 'scoped memory for tpu_custom_call.1']
    #allocation4 [shape = 's32[1]{0}', space=sflag, size = 0x4, scoped, tag = 'scoped memory for tpu_custom_call.1']
    #allocation5 [shape = 'u8[16384]{0}', space=vmem, size = 0x4000, scoped, tag = 'input window, operand 1, single buffered']
    #allocation6 [shape = 's32[1]{0}', space=sflag, size = 0x4, scoped, tag = 'scoped memory for tpu_custom_call.1']
    #allocation7 [shape = 'u8[8192]{0}', space=vmem, size = 0x2000, scoped, tag = 'input window, operand 2, single buffered']
    #allocation8 [shape = 'u8[8192]{0}', space=vmem, size = 0x2000, scoped, tag = 'output window, operand 0, single buffered']
    %9 = vsyncpa [#allocation3], 0
    %10 = vsyncpa [#allocation6], 0
    %11 = vsyncpa [#allocation4], 0
    // Predicated region
    $region2: #{tpu_custom_call.1} parent=1 // pred_check
      _
    $region3: #{tpu_custom_call.1} parent=1 // pred_check_branch
      %13 = sbr.rel (0) target = $region5
    $region4: #{tpu_custom_call.1} parent=1 // pred_region
      %15 = vsyncadd [#allocation3], 0
      %s16 = sshll.u32 %s0, 4
      %s17 = int_to_ptr.hbm [resolvable:$true] %s16
      %s18 = sshll.u32 [#allocation2], 4
      %s19 = int_to_ptr.vmem [resolvable:$true] %s18
      %24 = dma.hbm_to_vmem [thread:$0]  %s17, 256, %s19, [#allocation3], 128, 128, 8
    $region5: #{tpu_custom_call.1} parent=1 // pred_fallthru
      _
    // Predicated region
    $region6: #{tpu_custom_call.1} parent=1 // pred_check
      _
    $region7: #{tpu_custom_call.1} parent=1 // pred_check_branch
      %26 = sbr.rel (0) target = $region9
    $region8: #{tpu_custom_call.1} parent=1 // pred_region
      %28 = vsyncadd [#allocation6], 0
      %s29 = sshll.u32 %s1, 4
      %s30 = int_to_ptr.hbm [resolvable:$true] %s29
      %s31 = sshll.u32 [#allocation5], 4
      %s32 = int_to_ptr.vmem [resolvable:$true] %s31
      %37 = dma.hbm_to_vmem [thread:$0]  %s30, 512, %s32, [#allocation6], 128, 128, 8
    $region9: #{tpu_custom_call.1} parent=1 // pred_fallthru
      _
    // Predicated region
    $region10: #{tpu_custom_call.1} parent=1 // pred_check
      _
    $region11: #{tpu_custom_call.1} parent=1 // pred_check_branch
      %39 = sbr.rel (0) target = $region13
    $region12: #{tpu_custom_call.1} parent=1 // pred_region
      %41 = vsyncadd [#allocation6], 0
      %s42 = sshll.u32 %s2, 4
      %s43 = int_to_ptr.hbm [resolvable:$true] %s42
      %s44 = sshll.u32 [#allocation7], 4
      %s45 = int_to_ptr.vmem [resolvable:$true] %s44
      %50 = dma.hbm_to_vmem [thread:$0]  %s43, 256, %s45, [#allocation6], 128, 128, 8
    $region13: #{tpu_custom_call.1} parent=1 // pred_fallthru
      _
    // Predicated region
    $region14: #{tpu_custom_call.1} parent=1 // pred_check
      _
    $region15: #{tpu_custom_call.1} parent=1 // pred_check_branch
      %52 = sbr.rel (0) target = $region17
    $region16: #{tpu_custom_call.1} parent=1 // pred_region
      _
    $region17: #{tpu_custom_call.1} parent=1 // pred_fallthru
      _
    // Predicated region
    $region18: #{tpu_custom_call.1} parent=1 // pred_check
      _
    $region19: #{tpu_custom_call.1} parent=1 // pred_check_branch
      %54 = sbr.rel (0) target = $region21
    $region20: #{tpu_custom_call.1} parent=1 // pred_region
      %56 = dma.done [#allocation3], 256
    $region21: #{tpu_custom_call.1} parent=1 // pred_fallthru
      _
    // Predicated region
    $region22: #{tpu_custom_call.1} parent=1 // pred_check
      _
    $region23: #{tpu_custom_call.1} parent=1 // pred_check_branch
      %58 = sbr.rel (0) target = $region25
    $region24: #{tpu_custom_call.1} parent=1 // pred_region
      %60 = dma.done [#allocation6], 512
    $region25: #{tpu_custom_call.1} parent=1 // pred_fallthru
      _
    // Predicated region
    $region26: #{tpu_custom_call.1} parent=1 // pred_check
      _
    $region27: #{tpu_custom_call.1} parent=1 // pred_check_branch
      %62 = sbr.rel (0) target = $region29
    $region28: #{tpu_custom_call.1} parent=1 // pred_region
      %64 = dma.done [#allocation6], 256
    $region29: #{tpu_custom_call.1} parent=1 // pred_fallthru
      _
    %v65 = vld [vmem:[#allocation2] sm:$0xff]
    %v66 = vld [vmem:[#allocation2 + $0x8] sm:$0xff]
    %v67 = vld [vmem:[#allocation5] sm:$0xff]
    %v68 = vld [vmem:[#allocation5 + $0x8] sm:$0xff]
    %v69 = vld [vmem:[#allocation5 + $0x10] sm:$0xff]
    %v70 = vld [vmem:[#allocation5 + $0x18] sm:$0xff]
    %vm71 = vcmask 261120
    %v73 = vsel %vm71, %v65, 0
    %v76 = vsel %vm71, %v66, 0
    %78 = vmatpush.msra.mxu0 0.0
    %79 = vmatpush.msra.mxu0 0.0
    %80 = vmatpush.msra.mxu0 0.0
    %81 = vmatpush.msra.mxu0 0.0
    %82 = vmatpush.msra.mxu0 0.0
    %83 = vmatpush.msra.mxu0 0.0
    %84 = vmatpush.msra.mxu0 0.0
    %85 = vmatpush.msra.mxu0 0.0
    %86 = vmatpush.msra.mxu0 0.0
    %87 = vmatpush.msra.mxu0 0.0
    %88 = vmatpush.msra.mxu0 0.0
    %89 = vmatpush.msra.mxu0 0.0
    %90 = vmatpush.msra.mxu0 %v70
    %91 = vmatpush.msra.mxu0 %v69
    %92 = vmatpush.msra.mxu0 %v68
    %93 = vmatpush.msra.mxu0 %v67
    %94 = vmatmul.f32.gmra.mxu0 %v73
    %v95 = vpop.f32.mrf.mxu0
    %v96 = vadd.f32 0.0, %v95
    %97 = vmatmul.f32.gmra.mxu0 %v76
    %v98 = vpop.f32.mrf.mxu0
    %v99 = vadd.f32 0.0, %v98
    %100 = vdwg.mxu0
    %102 = vrot.lane.b32.xlu0 %v96, 112
    %v103 = vpop.permute.xlu0 %102
    %vm104 = vcmask 130048
    %v105 = vsel %vm104, %v96, 0
    %v107 = vsel %vm104, %v103, 0
    %109 = vmatpush.xpose.msra.mxu0 0.0
    %110 = vmatpush.xpose.msra.mxu0 0.0
    %111 = vmatpush.xpose.msra.mxu0 0.0
    %112 = vmatpush.xpose.msra.mxu0 0.0
    %113 = vmatpush.xpose.msra.mxu0 0.0
    %114 = vmatpush.xpose.msra.mxu0 0.0
    %115 = vmatpush.xpose.msra.mxu0 0.0
    %116 = vmatpush.xpose.msra.mxu0 0.0
    %117 = vmatpush.xpose.msra.mxu0 0.0
    %118 = vmatpush.xpose.msra.mxu0 0.0
    %119 = vmatpush.xpose.msra.mxu0 0.0
    %120 = vmatpush.xpose.msra.mxu0 0.0
    %121 = vmatpush.xpose.msra.mxu0 0.0
    %122 = vmatpush.xpose.msra.mxu0 0.0
    %123 = vmatpush.xpose.msra.mxu0 0.0
    %124 = vmatpush.xpose.msra.mxu0 %v107
    %125 = vmatmul.f32.gmra.mxu0 %v105
    %v126 = vpop.f32.mrf.mxu0
    %v127 = vadd.f32 0.0, %v126
    %128 = vdwg.mxu0
    %130 = vrot.lane.b32.xlu0 %v99, 112
    %v131 = vpop.permute.xlu0 %130
    %v132 = vsel %vm104, %v99, 0
    %v134 = vsel %vm104, %v131, 0
    %136 = vmatpush.xpose.msra.mxu0 0.0
    %137 = vmatpush.xpose.msra.mxu0 0.0
    %138 = vmatpush.xpose.msra.mxu0 0.0
    %139 = vmatpush.xpose.msra.mxu0 0.0
    %140 = vmatpush.xpose.msra.mxu0 0.0
    %141 = vmatpush.xpose.msra.mxu0 0.0
    %142 = vmatpush.xpose.msra.mxu0 0.0
    %143 = vmatpush.xpose.msra.mxu0 0.0
    %144 = vmatpush.xpose.msra.mxu0 0.0
    %145 = vmatpush.xpose.msra.mxu0 0.0
    %146 = vmatpush.xpose.msra.mxu0 0.0
    %147 = vmatpush.xpose.msra.mxu0 0.0
    %148 = vmatpush.xpose.msra.mxu0 0.0
    %149 = vmatpush.xpose.msra.mxu0 0.0
    %150 = vmatpush.xpose.msra.mxu0 0.0
    %151 = vmatpush.xpose.msra.mxu0 %v134
    %152 = vmatmul.f32.gmra.mxu0 %v132
    %v153 = vpop.f32.mrf.mxu0
    %v154 = vadd.f32 0.0, %v153
    %155 = vdwg.mxu0
    %v156 = vlaneseq
    %v157 = vshrl.u32 %v156, 7
    %v158 = vlaneseq
    %v159 = vand.u32 %v158, 127
    %vm160 = vcmp.le.s32.totalorder %v159, %v157
    %v161 = vsel %vm160, 1, 0
    %vm162 = vcmp.eq.s32.totalorder %v161, 1
    %v163 = vsel %vm162, %v127, -1e+30
    %v164 = vsel %vm162, %v154, -1e+30
    %vm165 = vcmask 64512
    %v166 = vsel %vm165, %v163, -inf
    %167 = vmax.xlane.f32.xlu0 %v166
    %v168 = vpop.xlane.xlu0 %167
    %v169 = vsel %vm165, %v164, -inf
    %170 = vmax.xlane.f32.xlu0 %v169
    %v171 = vpop.xlane.xlu0 %170
    %v172 = vsub.f32 %v163, %v168
    %v173 = vsub.f32 %v164, %v171
    %v174 = vmul.f32 %v172, 1.442695
    %v175 = vpow.pop %v174
    %v176 = vmul.f32 %v173, 1.442695
    %v177 = vpow.pop %v176
    %v178 = vsel %vm165, %v175, 0.0
    %179 = vadd.xlane.f32.xlu0 %v178
    %v180 = vpop.xlane.xlu0 %179
    %v181 = vsel %vm165, %v177, 0.0
    %182 = vadd.xlane.f32.xlu0 %v181
    %v183 = vpop.xlane.xlu0 %182
    %v184 = vrcp.pop %v180
    %v185 = vrcp.pop %v183
    %v186 = vmul.f32 %v175, %v184
    %v187 = vmul.f32 %v177, %v185
    %188 = vrot.lane.b32.xlu0 %v96, 96
    %v189 = vpop.permute.xlu0 %188
    %v192 = vsel %vm165, %v186, 0
    %194 = vmatpush.msra.mxu0 0.0
    %195 = vmatpush.msra.mxu0 0.0
    %196 = vmatpush.msra.mxu0 0.0
    %197 = vmatpush.msra.mxu0 0.0
    %198 = vmatpush.msra.mxu0 0.0
    %199 = vmatpush.msra.mxu0 0.0
    %200 = vmatpush.msra.mxu0 0.0
    %201 = vmatpush.msra.mxu0 0.0
    %202 = vmatpush.msra.mxu0 0.0
    %203 = vmatpush.msra.mxu0 0.0
    %204 = vmatpush.msra.mxu0 0.0
    %205 = vmatpush.msra.mxu0 0.0
    %206 = vmatpush.msra.mxu0 0.0
    %207 = vmatpush.msra.mxu0 0.0
    %208 = vmatpush.msra.mxu0 0.0
    %209 = vmatpush.msra.mxu0 %v189
    %210 = vmatmul.f32.gmra.mxu0 %v192
    %v211 = vpop.f32.mrf.mxu0
    %v212 = vadd.f32 0.0, %v211
    %213 = vdwg.mxu0
    %214 = vrot.lane.b32.xlu0 %v99, 96
    %v215 = vpop.permute.xlu0 %214
    %v218 = vsel %vm165, %v187, 0
    %220 = vmatpush.msra.mxu0 0.0
    %221 = vmatpush.msra.mxu0 0.0
    %222 = vmatpush.msra.mxu0 0.0
    %223 = vmatpush.msra.mxu0 0.0
    %224 = vmatpush.msra.mxu0 0.0
    %225 = vmatpush.msra.mxu0 0.0
    %226 = vmatpush.msra.mxu0 0.0
    %227 = vmatpush.msra.mxu0 0.0
    %228 = vmatpush.msra.mxu0 0.0
    %229 = vmatpush.msra.mxu0 0.0
    %230 = vmatpush.msra.mxu0 0.0
    %231 = vmatpush.msra.mxu0 0.0
    %232 = vmatpush.msra.mxu0 0.0
    %233 = vmatpush.msra.mxu0 0.0
    %234 = vmatpush.msra.mxu0 0.0
    %235 = vmatpush.msra.mxu0 %v215
    %236 = vmatmul.f32.gmra.mxu0 %v218
    %v237 = vpop.f32.mrf.mxu0
    %v238 = vadd.f32 0.0, %v237
    %239 = vdwg.mxu0
    %v240 = vld [vmem:[#allocation7] sm:$0xff]
    %v241 = vld [vmem:[#allocation7 + $0x8] sm:$0xff]
    %v242 = vld [vmem:[%s3] sm:$0x1]
    %v244 = vperm.slane %v242, 0
    %v247 = vsel %vm104, %v212, 0
    %v250 = vsel %vm104, %v238, 0
    %252 = vmatpush.msra.mxu0 0.0
    %253 = vmatpush.msra.mxu0 0.0
    %254 = vmatpush.msra.mxu0 0.0
    %255 = vmatpush.msra.mxu0 0.0
    %256 = vmatpush.msra.mxu0 0.0
    %257 = vmatpush.msra.mxu0 0.0
    %258 = vmatpush.msra.mxu0 0.0
    %259 = vmatpush.msra.mxu0 0.0
    %260 = vmatpush.msra.mxu0 0.0
    %261 = vmatpush.msra.mxu0 0.0
    %262 = vmatpush.msra.mxu0 0.0
    %263 = vmatpush.msra.mxu0 0.0
    %264 = vmatpush.msra.mxu0 0.0
    %265 = vmatpush.msra.mxu0 0.0
    %266 = vmatpush.msra.mxu0 %v241
    %267 = vmatpush.msra.mxu0 %v240
    %268 = vmatmul.f32.gmra.mxu0 %v247
    %v269 = vpop.f32.mrf.mxu0
    %v270 = vadd.f32 %v244, %v269
    %271 = vmatmul.f32.gmra.mxu0 %v250
    %v272 = vpop.f32.mrf.mxu0
    %v273 = vadd.f32 %v244, %v272
    %274 = vdwg.mxu0
    %275 = vst.msk [vmem:[#allocation8] sm:$0xff] %vm71, %v270
    %276 = vst.msk [vmem:[#allocation8 + $0x8] sm:$0xff] %vm71, %v273
    // Predicated region
    $region30: #{tpu_custom_call.1} parent=1 // pred_check
      _
    $region31: #{tpu_custom_call.1} parent=1 // pred_check_branch
      %278 = sbr.rel (0) target = $region33
    $region32: #{tpu_custom_call.1} parent=1 // pred_region
      %280 = vsyncadd [#allocation4], 0
      %s281 = sshll.u32 [#allocation8], 4
      %s282 = int_to_ptr.vmem [resolvable:$true] %s281
      %s283 = sshll.u32 %s4, 4
      %s284 = int_to_ptr.hbm [resolvable:$true] %s283
      %289 = dma.vmem_to_hbm [thread:$0]  %s282, 256, %s284, [#allocation4], 128, 128, 8
    $region33: #{tpu_custom_call.1} parent=1 // pred_fallthru
      _
    // Predicated region
    $region34: #{tpu_custom_call.1} parent=1 // pred_check
      _
    $region35: #{tpu_custom_call.1} parent=1 // pred_check_branch
      %291 = sbr.rel (0) target = $region37
    $region36: #{tpu_custom_call.1} parent=1 // pred_region
      %293 = dma.done [#allocation4], 256
    $region37: #{tpu_custom_call.1} parent=1 // pred_fallthru
      _
    %294 = vsyncpa [#allocation3], 1
    %295 = vsyncpa [#allocation6], 1
    %296 = vsyncpa [#allocation4], 1

</llo_original>
